<compile_context>
chip_gen: v6e
topology: v6e:2x2x1
jax: 0.10.0
libtpu: 0.0.40
codegen_flags: <defaults>
</compile_context>

<pallas_src>
import functools

import jax
import jax.numpy as jnp
from jax.experimental import pallas as pl
from jax.experimental.pallas import tpu as pltpu


VMEM_LIMIT = 32 * 1024 * 1024  # explicit scoped-VMEM budget (safe on v5e/v6e/v7x)


# -----------------------------------------------------------------------------
# Pallas kernels
# -----------------------------------------------------------------------------
def _pfn_kernel(x_ref, w_ref, scale_ref, bias_ref, out_ref, *, m_pts):
    """PillarVFE PFNLayer for a tile of pillars.

    x_ref:   (tp*M, Cin) bf16  -- point rows, pillar-major
    w_ref:   (Cin, Cout) bf16
    scale/bias: (1, Cout) f32  -- folded BatchNorm1d affine
    out_ref: (tp, Cout)  f32   -- per-pillar max over the M points
    """
    y = jnp.dot(x_ref[...], w_ref[...], preferred_element_type=jnp.float32)
    y = jnp.maximum(y * scale_ref[...] + bias_ref[...], 0.0)
    tp = y.shape[0] // m_pts
    out_ref[...] = jnp.max(y.reshape(tp, m_pts, y.shape[1]), axis=1)


def _mm_kernel(x_ref, w_ref, scale_ref, bias_ref, out_ref, *, relu):
    """Fused bf16 GEMM + f32 per-output-channel scale/bias (+ optional ReLU)."""
    y = jnp.dot(x_ref[...], w_ref[...], preferred_element_type=jnp.float32)
    y = y * scale_ref[...] + bias_ref[...]
    if relu:
        y = jnp.maximum(y, 0.0)
    out_ref[...] = y


def _conv_kernel(x_ref, w_ref, scale_ref, bias_ref, out_ref, *,
                 kh, kw, stride, n_rows, wcols):
    """Direct 3x3 conv + BN + ReLU for one batch image (phase-decomposed input).

    x_ref:   (1, s*s, R, Cin) bf16  -- flattened padded phase planes (R = Hh*Wh)
    w_ref:   (kh*kw, Cin, Cout) bf16
    scale/bias: (1, Cout) f32
    out_ref: (1, n_rows, Cout) f32  -- n_rows = Ho*Wh (junk cols sliced off outside)

    Each tap is a contiguous row-slice of one phase plane, so the 9 shifted
    accumulations reuse the VMEM-resident input without any im2col in HBM.
    """
    cout = w_ref.shape[-1]
    acc = jnp.zeros((n_rows, cout), jnp.float32)
    for ki in range(kh):
        for kj in range(kw):
            p = (ki % stride) * stride + (kj % stride)
            start = (ki // stride) * wcols + (kj // stride)
            win = x_ref[0, p, start:start + n_rows, :]
            acc = acc + jnp.dot(win, w_ref[ki * kw + kj],
                                preferred_element_type=jnp.float32)
    y = jnp.maximum(acc * scale_ref[...] + bias_ref[...], 0.0)
    out_ref[0] = y


# -----------------------------------------------------------------------------
# Kernel wrappers
# -----------------------------------------------------------------------------
def pillar_pfn(features, w, scale, bias, tp=128):
    """features: (P, M, Cin) f32 -> (P, Cout) pillar features (tiled over pillars)."""
    P, M, Cin = features.shape
    Cout = w.shape[1]
    tp = min(tp, ((P + 7) // 8) * 8)
    Pp = ((P + tp - 1) // tp) * tp
    x = features.reshape(P * M, Cin)
    if Pp != P:
        x = jnp.pad(x, ((0, (Pp - P) * M), (0, 0)))
    out = pl.pallas_call(
        functools.partial(_pfn_kernel, m_pts=M),
        out_shape=jax.ShapeDtypeStruct((Pp, Cout), jnp.float32),
        grid=(Pp // tp,),
        in_specs=[
            pl.BlockSpec((tp * M, Cin), lambda i: (i, 0)),
            pl.BlockSpec((Cin, Cout), lambda i: (0, 0)),
            pl.BlockSpec((1, Cout), lambda i: (0, 0)),
            pl.BlockSpec((1, Cout), lambda i: (0, 0)),
        ],
        out_specs=pl.BlockSpec((tp, Cout), lambda i: (i, 0)),
        compiler_params=pltpu.CompilerParams(
            dimension_semantics=("parallel",), vmem_limit_bytes=VMEM_LIMIT),
    )(x.astype(jnp.bfloat16), w.astype(jnp.bfloat16),
      scale.reshape(1, Cout).astype(jnp.float32),
      bias.reshape(1, Cout).astype(jnp.float32))
    return out[:P]


def fused_matmul(x, w, scale, bias, relu, tm=512):
    """O = act(scale * (x @ w) + bias), bf16 GEMM, f32 epilogue, tiled over rows."""
    M, K = x.shape
    N = w.shape[1]
    tm = min(tm, ((M + 7) // 8) * 8)
    Mp = ((M + tm - 1) // tm) * tm
    xp = jnp.pad(x, ((0, Mp - M), (0, 0))) if Mp != M else x
    out = pl.pallas_call(
        functools.partial(_mm_kernel, relu=relu),
        out_shape=jax.ShapeDtypeStruct((Mp, N), jnp.float32),
        grid=(Mp // tm,),
        in_specs=[
            pl.BlockSpec((tm, K), lambda i: (i, 0)),
            pl.BlockSpec((K, N), lambda i: (0, 0)),
            pl.BlockSpec((1, N), lambda i: (0, 0)),
            pl.BlockSpec((1, N), lambda i: (0, 0)),
        ],
        out_specs=pl.BlockSpec((tm, N), lambda i: (i, 0)),
        compiler_params=pltpu.CompilerParams(
            dimension_semantics=("parallel",), vmem_limit_bytes=VMEM_LIMIT),
    )(xp.astype(jnp.bfloat16), w.astype(jnp.bfloat16),
      scale.reshape(1, N).astype(jnp.float32),
      bias.reshape(1, N).astype(jnp.float32))
    return out[:M]


def conv_bn_relu(x_nhwc, w_oihw, scale, bias, stride, padding=1):
    """nn.Conv2d(k=3, bias=False) + BatchNorm2d + ReLU via a direct-conv kernel."""
    B, H, W, Cin = x_nhwc.shape
    Cout, _, kh, kw = w_oihw.shape
    s = stride
    Ho = (H + 2 * padding - kh) // s + 1
    Wo = (W + 2 * padding - kw) // s + 1
    Hp, Wp = H + 2 * padding, W + 2 * padding
    # Extra bottom rows so every tap's flattened row window stays in-bounds
    # (junk columns/rows are computed on zeros and sliced off afterwards).
    Hq = -(-Hp // s) * s + s
    Wq = -(-Wp // s) * s
    xp = jnp.pad(x_nhwc, ((0, 0), (padding, Hq - H - padding),
                          (padding, Wq - W - padding), (0, 0))).astype(jnp.bfloat16)
    if s == 1:
        phases = xp[:, None]                                  # (B, 1, Hq, Wq, Cin)
    else:
        phases = xp.reshape(B, Hq // s, s, Wq // s, s, Cin)
        phases = jnp.transpose(phases, (0, 2, 4, 1, 3, 5))    # (B, s, s, Hh, Wh, Cin)
        phases = phases.reshape(B, s * s, Hq // s, Wq // s, Cin)
    s2, Hh, Wh = phases.shape[1:4]
    R = Hh * Wh
    phases = phases.reshape(B, s2, R, Cin)
    n_rows = Ho * Wh
    wk = jnp.transpose(w_oihw, (2, 3, 1, 0)).reshape(kh * kw, Cin, Cout).astype(jnp.bfloat16)
    # TODO(synk): at production BEV sizes also tile the grid over output-row chunks;
    # one batch image per grid step is enough at these test shapes.
    out = pl.pallas_call(
        functools.partial(_conv_kernel, kh=kh, kw=kw, stride=s,
                          n_rows=n_rows, wcols=Wh),
        out_shape=jax.ShapeDtypeStruct((B, n_rows, Cout), jnp.float32),
        grid=(B,),
        in_specs=[
            pl.BlockSpec((1, s2, R, Cin), lambda b: (b, 0, 0, 0)),
            pl.BlockSpec((kh * kw, Cin, Cout), lambda b: (0, 0, 0)),
            pl.BlockSpec((1, Cout), lambda b: (0, 0)),
            pl.BlockSpec((1, Cout), lambda b: (0, 0)),
        ],
        out_specs=pl.BlockSpec((1, n_rows, Cout), lambda b: (b, 0, 0)),
        compiler_params=pltpu.CompilerParams(
            dimension_semantics=("parallel",), vmem_limit_bytes=VMEM_LIMIT),
    )(phases, wk, scale.reshape(1, Cout).astype(jnp.float32),
      bias.reshape(1, Cout).astype(jnp.float32))
    return out.reshape(B, Ho, Wh, Cout)[:, :, :Wo, :]


def deconv_bn_relu(x_nhwc, w_iohw, scale, bias, stride):
    """nn.ConvTranspose2d(kernel=stride, stride=stride, bias=False) + BN + ReLU."""
    B, H, W, Cin = x_nhwc.shape
    _, Cout, kh, kw = w_iohw.shape  # kh == kw == stride
    if stride == 1:
        # kernel_size==stride==1 -> plain fused 1x1 conv, no pixel shuffle needed.
        wm = w_iohw.reshape(Cin, Cout)
        out = fused_matmul(x_nhwc.reshape(B * H * W, Cin), wm, scale, bias, relu=True)
        return out.reshape(B, H, W, Cout)
    wm = jnp.transpose(w_iohw, (0, 2, 3, 1)).reshape(Cin, kh * kw * Cout)
    out = fused_matmul(x_nhwc.reshape(B * H * W, Cin), wm,
                       jnp.tile(scale, kh * kw), jnp.tile(bias, kh * kw), relu=True)
    out = out.reshape(B, H, W, kh, kw, Cout)
    # TODO(synk): the stride-2 pixel-shuffle interleave is a scatter in the output
    # layout; left to XLA (small tensor here) rather than faked in a BlockSpec.
    out = jnp.transpose(out, (0, 1, 3, 2, 4, 5)).reshape(B, H * kh, W * kw, Cout)
    return out


def fused_heads(x_nhwc, cls_p, reg_p):
    """cls_head + reg_head fused into one 1x1-conv GEMM, N zero-padded to 128 lanes."""
    B, H, W, Cin = x_nhwc.shape
    a = cls_p['w'].shape[0]
    n_real = a + 7 * a
    w = jnp.concatenate([cls_p['w'].reshape(a, Cin),
                         reg_p['w'].reshape(7 * a, Cin)], axis=0).T   # (Cin, 8a)
    b = jnp.concatenate([cls_p['b'], reg_p['b']])
    Np = max(128, ((n_real + 127) // 128) * 128)
    w = jnp.pad(w, ((0, 0), (0, Np - n_real)))
    b = jnp.pad(b, (0, Np - n_real))
    ones = jnp.ones((Np,), jnp.float32)
    out = fused_matmul(x_nhwc.reshape(B * H * W, Cin), w, ones, b, relu=False)
    out = out.reshape(B, H, W, Np)
    return out[..., :a], out[..., a:n_real]


def bn_fold(bn, eps=1e-3):
    scale = bn['gamma'] / jnp.sqrt(bn['var'] + eps)
    return scale, bn['beta'] - bn['mean'] * scale


# -----------------------------------------------------------------------------
# Full PointPillar forward
# -----------------------------------------------------------------------------
def point_pillar_forward(params, cfg, voxel_features, voxel_coords, voxel_num_points):
    vx, vy, vz = cfg['voxel_size']
    pcr = cfg['lidar_range']
    x_off = vx / 2.0 + pcr[0]
    y_off = vy / 2.0 + pcr[1]
    z_off = vz / 2.0 + pcr[2]

    # ---- PillarVFE feature augmentation (elementwise glue) ----
    vf = voxel_features.astype(jnp.float32)            # (P, M, 4)
    npts = voxel_num_points.astype(jnp.float32)        # (P,)
    # guard against 0-point pillars (identical for num_points >= 1)
    points_mean = vf[:, :, :3].sum(axis=1, keepdims=True) / jnp.maximum(npts, 1.0)[:, None, None]
    f_cluster = vf[:, :, :3] - points_mean
    cf = voxel_coords.astype(jnp.float32)
    f_center = jnp.stack(
        [vf[:, :, 0] - (cf[:, 3][:, None] * vx + x_off),
         vf[:, :, 1] - (cf[:, 2][:, None] * vy + y_off),
         vf[:, :, 2] - (cf[:, 1][:, None] * vz + z_off)], axis=-1)
    features = jnp.concatenate([vf, f_cluster, f_center], axis=-1)  # (P, M, 10)
    M = features.shape[1]
    mask = (jnp.arange(M)[None, :] < voxel_num_points[:, None]).astype(jnp.float32)
    features = features * mask[:, :, None]

    # ---- PFN layer (Pallas kernel, tiled over pillars) ----
    w_pfn = params['pfn']['w'].T                        # (10, 64)
    s_pfn, b_pfn = bn_fold(params['pfn']['bn'])
    pillar_features = pillar_pfn(features, w_pfn, s_pfn, b_pfn)     # (P, 64)

    # ---- PointPillarScatter ----
    # TODO(synk): scatter is a dynamic row-index assignment; done with JAX
    # .at[].set() instead of a Pallas kernel (no static BlockSpec form).
    nx_, ny_, B = cfg['grid_nx'], cfg['grid_ny'], cfg['batch_size']
    flat_idx = voxel_coords[:, 0] * (ny_ * nx_) + voxel_coords[:, 2] * nx_ + voxel_coords[:, 3]
    canvas = jnp.zeros((B * ny_ * nx_, pillar_features.shape[1]), jnp.float32)
    canvas = canvas.at[flat_idx].set(pillar_features)
    x = canvas.reshape(B, ny_, nx_, -1)                 # NHWC spatial_features

    # ---- BaseBEVBackbone (direct-conv Pallas kernels) ----
    ups = []
    for bi, blk in enumerate(params['blocks']):
        for li, layer in enumerate(blk):
            stride = cfg['layer_strides'][bi] if li == 0 else 1
            s, b = bn_fold(layer['bn'])
            x = conv_bn_relu(x, layer['w'], s, b, stride=stride, padding=1)
        db = params['deblocks'][bi]
        s, b = bn_fold(db['bn'])
        ups.append(deconv_bn_relu(x, db['w'], s, b, cfg['upsample_strides'][bi]))
    x = jnp.concatenate(ups, axis=-1)                   # spatial_features_2d (NHWC)

    # ---- heads (fused 1x1 conv, lane-padded Pallas GEMM) ----
    psm, rm = fused_heads(x, params['cls_head'], params['reg_head'])
    # TODO(synk): shrink_header / dir_head branches are config-disabled here.
    return {'cls_preds': jnp.transpose(psm, (0, 3, 1, 2)),
            'reg_preds': jnp.transpose(rm, (0, 3, 1, 2))}


# -----------------------------------------------------------------------------
# Deterministic parameter initialization
# -----------------------------------------------------------------------------
def init_params(key, cfg):
    keys = iter(jax.random.split(key, 128))

    def nrm(shape, s=0.1):
        return (s * jax.random.normal(next(keys), shape)).astype(jnp.float32)

    def bn(c):
        return {'gamma': 1.0 + nrm((c,)), 'beta': nrm((c,)),
                'mean': jnp.zeros((c,), jnp.float32),
                'var': jnp.ones((c,), jnp.float32)}

    params = {'pfn': {'w': nrm((64, 10)), 'bn': bn(64)}}   # Linear(10, 64, bias=False)

    blocks, c_in = [], 64
    for bi, cout in enumerate(cfg['num_filters']):
        layers = [{'w': nrm((cout, c_in, 3, 3)), 'bn': bn(cout)}]
        for _ in range(cfg['layer_nums'][bi]):
            layers.append({'w': nrm((cout, cout, 3, 3)), 'bn': bn(cout)})
        blocks.append(layers)
        c_in = cout
    params['blocks'] = blocks

    deblocks = []
    for bi, cu in enumerate(cfg['num_upsample_filter']):
        s = cfg['upsample_strides'][bi]
        deblocks.append({'w': nrm((cfg['num_filters'][bi], cu, s, s)), 'bn': bn(cu)})
    params['deblocks'] = deblocks

    out_c = sum(cfg['num_upsample_filter'])
    a = cfg['anchor_number']
    params['cls_head'] = {'w': nrm((a, out_c, 1, 1)), 'b': nrm((a,))}
    params['reg_head'] = {'w': nrm((7 * a, out_c, 1, 1)), 'b': nrm((7 * a,))}
    return params


CFG = dict(
    batch_size=2,
    voxel_size=(0.4, 0.4, 4.0),
    lidar_range=(0.0, -3.2, -3.0, 6.4, 3.2, 1.0),   # -> 16 x 16 BEV grid, nz=1
    grid_nx=16, grid_ny=16,
    max_points_per_voxel=8,
    layer_nums=[1, 1], layer_strides=[2, 2], num_filters=[64, 128],
    upsample_strides=[1, 2], num_upsample_filter=[64, 64],
    anchor_number=2,
)


if __name__ == "__main__":
    key = jax.random.PRNGKey(0)
    kp, kd = jax.random.split(key)
    params = init_params(kp, CFG)

    nx, ny = CFG['grid_nx'], CFG['grid_ny']
    Mpts = CFG['max_points_per_voxel']
    pillars_per_batch = 20
    kc0, kc1, kf, kn = jax.random.split(kd, 4)

    def make_coords(k, b):
        perm = jax.random.permutation(k, ny * nx)[:pillars_per_batch]
        ys = (perm // nx).astype(jnp.int32)
        xs = (perm % nx).astype(jnp.int32)
        return jnp.stack([jnp.full_like(ys, b), jnp.zeros_like(ys), ys, xs], axis=1)

    voxel_coords = jnp.concatenate([make_coords(kc0, 0), make_coords(kc1, 1)], axis=0)
    P = voxel_coords.shape[0]
    lo = jnp.array([0.0, -3.2, -3.0, 0.0], jnp.float32)
    hi = jnp.array([6.4, 3.2, 1.0, 1.0], jnp.float32)
    voxel_features = jax.random.uniform(kf, (P, Mpts, 4), dtype=jnp.float32) * (hi - lo) + lo
    voxel_num_points = jax.random.randint(kn, (P,), 1, Mpts + 1)

    out = point_pillar_forward(params, CFG, voxel_features, voxel_coords, voxel_num_points)
    jax.block_until_ready(out)

    assert out['cls_preds'].shape == (CFG['batch_size'], CFG['anchor_number'], 8, 8)
    assert out['reg_preds'].shape == (CFG['batch_size'], 7 * CFG['anchor_number'], 8, 8)
    print("KERNEL_OK")
</pallas_src>

<mosaic_0001>
module attributes {stable_mosaic.version = 11 : i64} {
  func.func @_pfn_kernel(%arg0: i32, %arg1: memref<320x10xbf16, #tpu.memory_space<vmem>>, %arg2: memref<10x64xbf16, #tpu.memory_space<vmem>>, %arg3: memref<1x64xf32, #tpu.memory_space<vmem>>, %arg4: memref<1x64xf32, #tpu.memory_space<vmem>>, %arg5: memref<40x64xf32, #tpu.memory_space<vmem>>) attributes {dimension_semantics = [#tpu.dimension_semantics<parallel>], iteration_bounds = array<i64: 1>, scalar_prefetch = 0 : i64, scratch_operands = 0 : i64, tpu.core_type = #tpu.core_type<tc>, window_params = [{transform_indices = @transform_0, window_bounds = array<i64: 320, 10>}, {pipeline_mode = #tpu.pipeline_mode<synchronous>, transform_indices = @transform_1, window_bounds = array<i64: 10, 64>}, {pipeline_mode = #tpu.pipeline_mode<synchronous>, transform_indices = @transform_2, window_bounds = array<i64: 1, 64>}, {pipeline_mode = #tpu.pipeline_mode<synchronous>, transform_indices = @transform_3, window_bounds = array<i64: 1, 64>}, {transform_indices = @transform_4, window_bounds = array<i64: 40, 64>}]} {
    %c0 = arith.constant 0 : index
    %c0_0 = arith.constant 0 : index
    %0 = vector.load %arg1[%c0, %c0_0] : memref<320x10xbf16, #tpu.memory_space<vmem>>, vector<320x10xbf16>
    %c0_1 = arith.constant 0 : index
    %c0_2 = arith.constant 0 : index
    %1 = vector.load %arg2[%c0_1, %c0_2] : memref<10x64xbf16, #tpu.memory_space<vmem>>, vector<10x64xbf16>
    %cst = arith.constant dense<0.000000e+00> : vector<320x64xf32>
    %2 = tpu.matmul %0, %1, %cst {dimension_numbers = #tpu.dot_dimension_numbers<[1], [0], [0], [1], [0, 0, 1, 1], [], []>} : vector<320x10xbf16>, vector<10x64xbf16>, vector<320x64xf32> -> vector<320x64xf32>
    %c0_3 = arith.constant 0 : index
    %c0_4 = arith.constant 0 : index
    %3 = vector.load %arg3[%c0_3, %c0_4] : memref<1x64xf32, #tpu.memory_space<vmem>>, vector<1x64xf32>
    %4 = vector.broadcast %3 : vector<1x64xf32> to vector<320x64xf32>
    %5 = arith.mulf %2, %4 : vector<320x64xf32>
    %c0_5 = arith.constant 0 : index
    %c0_6 = arith.constant 0 : index
    %6 = vector.load %arg4[%c0_5, %c0_6] : memref<1x64xf32, #tpu.memory_space<vmem>>, vector<1x64xf32>
    %7 = vector.broadcast %6 : vector<1x64xf32> to vector<320x64xf32>
    %8 = arith.addf %5, %7 : vector<320x64xf32>
    %cst_7 = arith.constant 0.000000e+00 : f32
    %9 = vector.broadcast %cst_7 : f32 to vector<320x64xf32>
    %10 = arith.maximumf %8, %9 : vector<320x64xf32>
    %11 = vector.shape_cast %10 : vector<320x64xf32> to vector<40x8x64xf32>
    %cst_8 = arith.constant dense<0xFF800000> : vector<40x64xf32>
    %12 = vector.multi_reduction <maximumf>, %11, %cst_8 [1] : vector<40x8x64xf32> to vector<40x64xf32>
    %c0_9 = arith.constant 0 : index
    %c0_10 = arith.constant 0 : index
    %13 = vector.load %arg5[%c0_9, %c0_10] : memref<40x64xf32, #tpu.memory_space<vmem>>, vector<40x64xf32>
    tpu.vector_store %arg5[%c0_9, %c0_10], %12 {strides = array<i32>} : memref<40x64xf32, #tpu.memory_space<vmem>>, vector<40x64xf32>,
    return
  }
  func.func @transform_0(%arg0: i32) -> (i32, i32) {
    %c0_i32 = arith.constant 0 : i32
    %c0_i32_0 = arith.constant 0 : i32
    return %arg0, %c0_i32 : i32, i32
  }
  func.func @transform_1(%arg0: i32) -> (i32, i32) {
    %c0_i32 = arith.constant 0 : i32
    %c0_i32_0 = arith.constant 0 : i32
    %c0_i32_1 = arith.constant 0 : i32
    return %c0_i32, %c0_i32_0 : i32, i32
  }
  func.func @transform_2(%arg0: i32) -> (i32, i32) {
    %c0_i32 = arith.constant 0 : i32
    %c0_i32_0 = arith.constant 0 : i32
    %c0_i32_1 = arith.constant 0 : i32
    return %c0_i32, %c0_i32_0 : i32, i32
  }
  func.func @transform_3(%arg0: i32) -> (i32, i32) {
    %c0_i32 = arith.constant 0 : i32
    %c0_i32_0 = arith.constant 0 : i32
    %c0_i32_1 = arith.constant 0 : i32
    return %c0_i32, %c0_i32_0 : i32, i32
  }
  func.func @transform_4(%arg0: i32) -> (i32, i32) {
    %c0_i32 = arith.constant 0 : i32
    %c0_i32_0 = arith.constant 0 : i32
    return %arg0, %c0_i32 : i32, i32
  }
}

</mosaic_0001>

<llo_original>
// kernel: tpu_custom_call.1
$region0: #{tpu_custom_call.1}
  #allocation0 [shape = 'u32[]', space=smem, size = 0x4, offset = 0x4, fixed_abs, tag = 'smem constant byte address 0x4 - core index']
  #allocation1 [shape = 'u32[144,128]{1,0:T(1,128)}', space=vmem, size = 0x12000, scoped, tag = 'internal scratch']
  %s0 = inlined_call_operand.vmem [shape: bf16[320,10], index: 0, kind: input, shape index: {}]
  %s1 = inlined_call_operand.vmem [shape: bf16[10,64], index: 1, kind: input, shape index: {}]
  %s2 = inlined_call_operand.vmem [shape: f32[1,64], index: 2, kind: input, shape index: {}]
  %s3 = inlined_call_operand.vmem [shape: f32[1,64], index: 3, kind: input, shape index: {}]
  %s4 = inlined_call_operand.hbm [shape: f32[40,64], index: 4, kind: output, shape index: {}]
  %s5 = sld [smem:[#allocation0]]
  $region26: #{tpu_custom_call.1} parent=0
    _
  %s7 = ssub.s32 1, %s5
  %s8 = scalar_select 0, %s7, %s5
  $region1: #{tpu_custom_call.1} parent=0
    #allocation2 [shape = 'u8[20480]{0}', space=vmem, size = 0x5000, scoped, tag = 'output window, operand 0, single buffered']
    #allocation3 [shape = 's32[1]{0}', space=sflag, size = 0x4, scoped, tag = 'scoped memory for tpu_custom_call.1']
    %9 = vsyncpa [#allocation3], 0
    // Predicated region
    $region2: #{tpu_custom_call.1} parent=1 // pred_check
      _
    $region3: #{tpu_custom_call.1} parent=1 // pred_check_branch
      %11 = sbr.rel (0) target = $region5
    $region4: #{tpu_custom_call.1} parent=1 // pred_region
      _
    $region5: #{tpu_custom_call.1} parent=1 // pred_fallthru
      _
    // Predicated region
    $region6: #{tpu_custom_call.1} parent=1 // pred_check
      _
    $region7: #{tpu_custom_call.1} parent=1 // pred_check_branch
      %13 = sbr.rel (0) target = $region9
    $region8: #{tpu_custom_call.1} parent=1 // pred_region
      _
    $region9: #{tpu_custom_call.1} parent=1 // pred_fallthru
      _
    // Predicated region
    $region10: #{tpu_custom_call.1} parent=1 // pred_check
      _
    $region11: #{tpu_custom_call.1} parent=1 // pred_check_branch
      %15 = sbr.rel (0) target = $region13
    $region12: #{tpu_custom_call.1} parent=1 // pred_region
      _
    $region13: #{tpu_custom_call.1} parent=1 // pred_fallthru
      _
    // Predicated region
    $region14: #{tpu_custom_call.1} parent=1 // pred_check
      _
    $region15: #{tpu_custom_call.1} parent=1 // pred_check_branch
      %17 = sbr.rel (0) target = $region17
    $region16: #{tpu_custom_call.1} parent=1 // pred_region
      _
    $region17: #{tpu_custom_call.1} parent=1 // pred_fallthru
      _
    %v19 = vld [vmem:[%s0] sm:$0xf]
    %v20 = vld [vmem:[%s0 + $0x4] sm:$0xf]
    %v21 = vld [vmem:[%s0 + $0x8] sm:$0xf]
    %v22 = vld [vmem:[%s0 + $0xc] sm:$0xf]
    %v23 = vld [vmem:[%s0 + $0x10] sm:$0xf]
    %v24 = vld [vmem:[%s0 + $0x14] sm:$0xf]
    %v25 = vld [vmem:[%s0 + $0x18] sm:$0xf]
    %v26 = vld [vmem:[%s0 + $0x1c] sm:$0xf]
    %v27 = vld [vmem:[%s0 + $0x20] sm:$0xf]
    %v28 = vld [vmem:[%s0 + $0x24] sm:$0xf]
    %v29 = vld [vmem:[%s0 + $0x28] sm:$0xf]
    %v30 = vld [vmem:[%s0 + $0x2c] sm:$0xf]
    %v31 = vld [vmem:[%s0 + $0x30] sm:$0xf]
    %v32 = vld [vmem:[%s0 + $0x34] sm:$0xf]
    %v33 = vld [vmem:[%s0 + $0x38] sm:$0xf]
    %v34 = vld [vmem:[%s0 + $0x3c] sm:$0xf]
    %v35 = vld [vmem:[%s0 + $0x40] sm:$0xf]
    %v36 = vld [vmem:[%s0 + $0x44] sm:$0xf]
    %v37 = vld [vmem:[%s0 + $0x48] sm:$0xf]
    %v38 = vld [vmem:[%s0 + $0x4c] sm:$0xf]
    %v39 = vld [vmem:[%s0 + $0x50] sm:$0xf]
    %v40 = vld [vmem:[%s0 + $0x54] sm:$0xf]
    %v41 = vld [vmem:[%s0 + $0x58] sm:$0xf]
    %v42 = vld [vmem:[%s0 + $0x5c] sm:$0xf]
    %v43 = vld [vmem:[%s0 + $0x60] sm:$0xf]
    %v44 = vld [vmem:[%s0 + $0x64] sm:$0xf]
    %v45 = vld [vmem:[%s0 + $0x68] sm:$0xf]
    %v46 = vld [vmem:[%s0 + $0x6c] sm:$0xf]
    %v47 = vld [vmem:[%s0 + $0x70] sm:$0xf]
    %v48 = vld [vmem:[%s0 + $0x74] sm:$0xf]
    %v49 = vld [vmem:[%s0 + $0x78] sm:$0xf]
    %v50 = vld [vmem:[%s0 + $0x7c] sm:$0xf]
    %v51 = vld [vmem:[%s0 + $0x80] sm:$0xf]
    %v52 = vld [vmem:[%s0 + $0x84] sm:$0xf]
    %v53 = vld [vmem:[%s0 + $0x88] sm:$0xf]
    %v54 = vld [vmem:[%s0 + $0x8c] sm:$0xf]
    %v55 = vld [vmem:[%s0 + $0x90] sm:$0xf]
    %v56 = vld [vmem:[%s0 + $0x94] sm:$0xf]
    %v57 = vld [vmem:[%s0 + $0x98] sm:$0xf]
    %v58 = vld [vmem:[%s0 + $0x9c] sm:$0xf]
    %v59 = vld [vmem:[%s1] sm:$0xf]
    %v60 = vld [vmem:[%s1 + $0x4] sm:$0x1]
    %v101 = vunpack.c.l.b16 %v19
    %v102 = vunpack.c.l.b16 %v20
    %v103 = vunpack.c.l.b16 %v21
    %v104 = vunpack.c.l.b16 %v22
    %v105 = vunpack.c.l.b16 %v23
    %v106 = vunpack.c.l.b16 %v24
    %v107 = vunpack.c.l.b16 %v25
    %v108 = vunpack.c.l.b16 %v26
    %v109 = vunpack.c.l.b16 %v27
    %v110 = vunpack.c.l.b16 %v28
    %v111 = vunpack.c.l.b16 %v29
    %v112 = vunpack.c.l.b16 %v30
    %v113 = vunpack.c.l.b16 %v31
    %v114 = vunpack.c.l.b16 %v32
    %v115 = vunpack.c.l.b16 %v33
    %v116 = vunpack.c.l.b16 %v34
    %v117 = vunpack.c.l.b16 %v35
    %v118 = vunpack.c.l.b16 %v36
    %v119 = vunpack.c.l.b16 %v37
    %v120 = vunpack.c.l.b16 %v38
    %v121 = vunpack.c.l.b16 %v39
    %v122 = vunpack.c.l.b16 %v40
    %v123 = vunpack.c.l.b16 %v41
    %v124 = vunpack.c.l.b16 %v42
    %v125 = vunpack.c.l.b16 %v43
    %v126 = vunpack.c.l.b16 %v44
    %v127 = vunpack.c.l.b16 %v45
    %v128 = vunpack.c.l.b16 %v46
    %v129 = vunpack.c.l.b16 %v47
    %v130 = vunpack.c.l.b16 %v48
    %v131 = vunpack.c.l.b16 %v49
    %v132 = vunpack.c.l.b16 %v50
    %v133 = vunpack.c.l.b16 %v51
    %v134 = vunpack.c.l.b16 %v52
    %v135 = vunpack.c.l.b16 %v53
    %v136 = vunpack.c.l.b16 %v54
    %v137 = vunpack.c.l.b16 %v55
    %v138 = vunpack.c.l.b16 %v56
    %v139 = vunpack.c.l.b16 %v57
    %v140 = vunpack.c.l.b16 %v58
    %v141 = vpack.c.b16 %v102, %v101
    %v142 = vpack.c.b16 %v104, %v103
    %v143 = vpack.c.b16 %v106, %v105
    %v144 = vpack.c.b16 %v108, %v107
    %v145 = vpack.c.b16 %v110, %v109
    %v146 = vpack.c.b16 %v112, %v111
    %v147 = vpack.c.b16 %v114, %v113
    %v148 = vpack.c.b16 %v116, %v115
    %v149 = vpack.c.b16 %v118, %v117
    %v150 = vpack.c.b16 %v120, %v119
    %v151 = vpack.c.b16 %v122, %v121
    %v152 = vpack.c.b16 %v124, %v123
    %v153 = vpack.c.b16 %v126, %v125
    %v154 = vpack.c.b16 %v128, %v127
    %v155 = vpack.c.b16 %v130, %v129
    %v156 = vpack.c.b16 %v132, %v131
    %v157 = vpack.c.b16 %v134, %v133
    %v158 = vpack.c.b16 %v136, %v135
    %v159 = vpack.c.b16 %v138, %v137
    %v160 = vpack.c.b16 %v140, %v139
    %v163 = vunpack.c.l.b16 %v59
    %v164 = vunpack.c.l.b16 %v60
    %v165 = vpack.c.b16 %v164, %v163
    %vm166 = vcmask 80896
    %v168 = vsel %vm166, %v141, 0
    %v171 = vsel %vm166, %v142, 0
    %v174 = vsel %vm166, %v143, 0
    %v177 = vsel %vm166, %v144, 0
    %v180 = vsel %vm166, %v145, 0
    %v183 = vsel %vm166, %v146, 0
    %v186 = vsel %vm166, %v147, 0
    %v189 = vsel %vm166, %v148, 0
    %v192 = vsel %vm166, %v149, 0
    %v195 = vsel %vm166, %v150, 0
    %v198 = vsel %vm166, %v151, 0
    %v201 = vsel %vm166, %v152, 0
    %v204 = vsel %vm166, %v153, 0
    %v207 = vsel %vm166, %v154, 0
    %v210 = vsel %vm166, %v155, 0
    %v213 = vsel %vm166, %v156, 0
    %v216 = vsel %vm166, %v157, 0
    %v219 = vsel %vm166, %v158, 0
    %v222 = vsel %vm166, %v159, 0
    %v225 = vsel %vm166, %v160, 0
    %vm227 = vcmask 1044480
    %v229 = vsel %vm227, %v165, 0
    %231 = vmatprep.subr.bf16.mxu0 0
    %232 = vmatpush1.bf16.msra.mxu0 0
    %233 = vmatprep.subr.bf16.mxu0 0
    %234 = vmatpush1.bf16.msra.mxu0 0
    %235 = vmatprep.subr.bf16.mxu0 0
    %236 = vmatpush1.bf16.msra.mxu0 0
    %237 = vmatprep.subr.bf16.mxu0 0
    %238 = vmatpush1.bf16.msra.mxu0 0
    %239 = vmatprep.subr.bf16.mxu0 0
    %240 = vmatpush1.bf16.msra.mxu0 0
    %241 = vmatprep.subr.bf16.mxu0 0
    %242 = vmatpush1.bf16.msra.mxu0 0
    %243 = vmatprep.subr.bf16.mxu0 0
    %244 = vmatpush1.bf16.msra.mxu0 0
    %245 = vmatprep.subr.bf16.mxu0 0
    %246 = vmatpush1.bf16.msra.mxu0 %v229
    %247 = vmatprep.subr.bf16.mxu0 0
    %248 = vmatpush2.bf16.msra.mxu0 0
    %249 = vmatprep.subr.bf16.mxu0 0
    %250 = vmatpush2.bf16.msra.mxu0 0
    %251 = vmatprep.subr.bf16.mxu0 0
    %252 = vmatpush2.bf16.msra.mxu0 0
    %253 = vmatprep.subr.bf16.mxu0 0
    %254 = vmatpush2.bf16.msra.mxu0 0
    %255 = vmatprep.subr.bf16.mxu0 0
    %256 = vmatpush2.bf16.msra.mxu0 0
    %257 = vmatprep.subr.bf16.mxu0 0
    %258 = vmatpush2.bf16.msra.mxu0 0
    %259 = vmatprep.subr.bf16.mxu0 0
    %260 = vmatpush2.bf16.msra.mxu0 0
    %261 = vmatprep.subr.bf16.mxu0 0
    %262 = vmatpush2.bf16.msra.mxu0 0
    %263 = vmatprep.mubr.bf16.mxu0 0
    %264 = vmatmul.mubr.bf16.gmra.mxu0 %v168
    %v265 = vpop.f32.mrf.mxu0
    %v266 = vadd.f32 0.0, %v265
    %v267 = vpop.f32.mrf.mxu0
    %v268 = vpop.f32.mrf.mxu0
    %v269 = vadd.f32 0.0, %v268
    %v270 = vpop.f32.mrf.mxu0
    %271 = vmatprep.mubr.bf16.mxu0 0
    %272 = vmatmul.mubr.bf16.gmra.mxu0 %v171
    %v273 = vpop.f32.mrf.mxu0
    %v274 = vadd.f32 0.0, %v273
    %v275 = vpop.f32.mrf.mxu0
    %v276 = vpop.f32.mrf.mxu0
    %v277 = vadd.f32 0.0, %v276
    %v278 = vpop.f32.mrf.mxu0
    %279 = vmatprep.mubr.bf16.mxu0 0
    %280 = vmatmul.mubr.bf16.gmra.mxu0 %v174
    %v281 = vpop.f32.mrf.mxu0
    %v282 = vadd.f32 0.0, %v281
    %v283 = vpop.f32.mrf.mxu0
    %v284 = vpop.f32.mrf.mxu0
    %v285 = vadd.f32 0.0, %v284
    %v286 = vpop.f32.mrf.mxu0
    %287 = vmatprep.mubr.bf16.mxu0 0
    %288 = vmatmul.mubr.bf16.gmra.mxu0 %v177
    %v289 = vpop.f32.mrf.mxu0
    %v290 = vadd.f32 0.0, %v289
    %v291 = vpop.f32.mrf.mxu0
    %v292 = vpop.f32.mrf.mxu0
    %v293 = vadd.f32 0.0, %v292
    %v294 = vpop.f32.mrf.mxu0
    %295 = vmatprep.mubr.bf16.mxu0 0
    %296 = vmatmul.mubr.bf16.gmra.mxu0 %v180
    %v297 = vpop.f32.mrf.mxu0
    %v298 = vadd.f32 0.0, %v297
    %v299 = vpop.f32.mrf.mxu0
    %v300 = vpop.f32.mrf.mxu0
    %v301 = vadd.f32 0.0, %v300
    %v302 = vpop.f32.mrf.mxu0
    %303 = vmatprep.mubr.bf16.mxu0 0
    %304 = vmatmul.mubr.bf16.gmra.mxu0 %v183
    %v305 = vpop.f32.mrf.mxu0
    %v306 = vadd.f32 0.0, %v305
    %v307 = vpop.f32.mrf.mxu0
    %v308 = vpop.f32.mrf.mxu0
    %v309 = vadd.f32 0.0, %v308
    %v310 = vpop.f32.mrf.mxu0
    %311 = vmatprep.mubr.bf16.mxu0 0
    %312 = vmatmul.mubr.bf16.gmra.mxu0 %v186
    %v313 = vpop.f32.mrf.mxu0
    %v314 = vadd.f32 0.0, %v313
    %v315 = vpop.f32.mrf.mxu0
    %v316 = vpop.f32.mrf.mxu0
    %v317 = vadd.f32 0.0, %v316
    %v318 = vpop.f32.mrf.mxu0
    %319 = vmatprep.mubr.bf16.mxu0 0
    %320 = vmatmul.mubr.bf16.gmra.mxu0 %v189
    %v321 = vpop.f32.mrf.mxu0
    %v322 = vadd.f32 0.0, %v321
    %v323 = vpop.f32.mrf.mxu0
    %v324 = vpop.f32.mrf.mxu0
    %v325 = vadd.f32 0.0, %v324
    %v326 = vpop.f32.mrf.mxu0
    %327 = vmatprep.mubr.bf16.mxu0 0
    %328 = vmatmul.mubr.bf16.gmra.mxu0 %v192
    %v329 = vpop.f32.mrf.mxu0
    %v330 = vadd.f32 0.0, %v329
    %v331 = vpop.f32.mrf.mxu0
    %v332 = vpop.f32.mrf.mxu0
    %v333 = vadd.f32 0.0, %v332
    %v334 = vpop.f32.mrf.mxu0
    %335 = vmatprep.mubr.bf16.mxu0 0
    %336 = vmatmul.mubr.bf16.gmra.mxu0 %v195
    %v337 = vpop.f32.mrf.mxu0
    %v338 = vadd.f32 0.0, %v337
    %v339 = vpop.f32.mrf.mxu0
    %v340 = vpop.f32.mrf.mxu0
    %v341 = vadd.f32 0.0, %v340
    %v342 = vpop.f32.mrf.mxu0
    %343 = vmatprep.mubr.bf16.mxu0 0
    %344 = vmatmul.mubr.bf16.gmra.mxu0 %v198
    %v345 = vpop.f32.mrf.mxu0
    %v346 = vadd.f32 0.0, %v345
    %v347 = vpop.f32.mrf.mxu0
    %v348 = vpop.f32.mrf.mxu0
    %v349 = vadd.f32 0.0, %v348
    %v350 = vpop.f32.mrf.mxu0
    %351 = vmatprep.mubr.bf16.mxu0 0
    %352 = vmatmul.mubr.bf16.gmra.mxu0 %v201
    %v353 = vpop.f32.mrf.mxu0
    %v354 = vadd.f32 0.0, %v353
    %v355 = vpop.f32.mrf.mxu0
    %v356 = vpop.f32.mrf.mxu0
    %v357 = vadd.f32 0.0, %v356
    %v358 = vpop.f32.mrf.mxu0
    %359 = vmatprep.mubr.bf16.mxu0 0
    %360 = vmatmul.mubr.bf16.gmra.mxu0 %v204
    %v361 = vpop.f32.mrf.mxu0
    %v362 = vadd.f32 0.0, %v361
    %v363 = vpop.f32.mrf.mxu0
    %v364 = vpop.f32.mrf.mxu0
    %v365 = vadd.f32 0.0, %v364
    %v366 = vpop.f32.mrf.mxu0
    %367 = vmatprep.mubr.bf16.mxu0 0
    %368 = vmatmul.mubr.bf16.gmra.mxu0 %v207
    %v369 = vpop.f32.mrf.mxu0
    %v370 = vadd.f32 0.0, %v369
    %v371 = vpop.f32.mrf.mxu0
    %v372 = vpop.f32.mrf.mxu0
    %v373 = vadd.f32 0.0, %v372
    %v374 = vpop.f32.mrf.mxu0
    %375 = vmatprep.mubr.bf16.mxu0 0
    %376 = vmatmul.mubr.bf16.gmra.mxu0 %v210
    %v377 = vpop.f32.mrf.mxu0
    %v378 = vadd.f32 0.0, %v377
    %v379 = vpop.f32.mrf.mxu0
    %v380 = vpop.f32.mrf.mxu0
    %v381 = vadd.f32 0.0, %v380
    %v382 = vpop.f32.mrf.mxu0
    %383 = vmatprep.mubr.bf16.mxu0 0
    %384 = vmatmul.mubr.bf16.gmra.mxu0 %v213
    %v385 = vpop.f32.mrf.mxu0
    %v386 = vadd.f32 0.0, %v385
    %v387 = vpop.f32.mrf.mxu0
    %v388 = vpop.f32.mrf.mxu0
    %v389 = vadd.f32 0.0, %v388
    %v390 = vpop.f32.mrf.mxu0
    %391 = vmatprep.mubr.bf16.mxu0 0
    %392 = vmatmul.mubr.bf16.gmra.mxu0 %v216
    %v393 = vpop.f32.mrf.mxu0
    %v394 = vadd.f32 0.0, %v393
    %v395 = vpop.f32.mrf.mxu0
    %v396 = vpop.f32.mrf.mxu0
    %v397 = vadd.f32 0.0, %v396
    %v398 = vpop.f32.mrf.mxu0
    %399 = vmatprep.mubr.bf16.mxu0 0
    %400 = vmatmul.mubr.bf16.gmra.mxu0 %v219
    %v401 = vpop.f32.mrf.mxu0
    %v402 = vadd.f32 0.0, %v401
    %v403 = vpop.f32.mrf.mxu0
    %v404 = vpop.f32.mrf.mxu0
    %v405 = vadd.f32 0.0, %v404
    %v406 = vpop.f32.mrf.mxu0
    %407 = vmatprep.mubr.bf16.mxu0 0
    %408 = vmatmul.mubr.bf16.gmra.mxu0 %v222
    %v409 = vpop.f32.mrf.mxu0
    %v410 = vadd.f32 0.0, %v409
    %v411 = vpop.f32.mrf.mxu0
    %v412 = vpop.f32.mrf.mxu0
    %v413 = vadd.f32 0.0, %v412
    %v414 = vpop.f32.mrf.mxu0
    %415 = vmatprep.mubr.bf16.mxu0 0
    %416 = vmatmul.mubr.bf16.gmra.mxu0 %v225
    %v417 = vpop.f32.mrf.mxu0
    %v418 = vadd.f32 0.0, %v417
    %v419 = vpop.f32.mrf.mxu0
    %v420 = vpop.f32.mrf.mxu0
    %v421 = vadd.f32 0.0, %v420
    %v422 = vpop.f32.mrf.mxu0
    %423 = vdwg.mxu0
    %v424 = vld [vmem:[%s2] sm:$0x1]
    %v426 = vlaneseq
    %v427 = vshrl.u32 %v426, 7
    %v428 = vsub.s32 0, %v427
    %v429 = vrot.slane %v424, %v428
    %v431 = vmul.f32 %v266, %v429
    %v432 = vmul.f32 %v269, %v429
    %v433 = vmul.f32 %v274, %v429
    %v434 = vmul.f32 %v277, %v429
    %v435 = vmul.f32 %v282, %v429
    %v436 = vmul.f32 %v285, %v429
    %v437 = vmul.f32 %v290, %v429
    %v438 = vmul.f32 %v293, %v429
    %v439 = vmul.f32 %v298, %v429
    %v440 = vmul.f32 %v301, %v429
    %v441 = vmul.f32 %v306, %v429
    %v442 = vmul.f32 %v309, %v429
    %v443 = vmul.f32 %v314, %v429
    %v444 = vmul.f32 %v317, %v429
    %v445 = vmul.f32 %v322, %v429
    %v446 = vmul.f32 %v325, %v429
    %v447 = vmul.f32 %v330, %v429
    %v448 = vmul.f32 %v333, %v429
    %v449 = vmul.f32 %v338, %v429
    %v450 = vmul.f32 %v341, %v429
    %v451 = vmul.f32 %v346, %v429
    %v452 = vmul.f32 %v349, %v429
    %v453 = vmul.f32 %v354, %v429
    %v454 = vmul.f32 %v357, %v429
    %v455 = vmul.f32 %v362, %v429
    %v456 = vmul.f32 %v365, %v429
    %v457 = vmul.f32 %v370, %v429
    %v458 = vmul.f32 %v373, %v429
    %v459 = vmul.f32 %v378, %v429
    %v460 = vmul.f32 %v381, %v429
    %v461 = vmul.f32 %v386, %v429
    %v462 = vmul.f32 %v389, %v429
    %v463 = vmul.f32 %v394, %v429
    %v464 = vmul.f32 %v397, %v429
    %v465 = vmul.f32 %v402, %v429
    %v466 = vmul.f32 %v405, %v429
    %v467 = vmul.f32 %v410, %v429
    %v468 = vmul.f32 %v413, %v429
    %v469 = vmul.f32 %v418, %v429
    %v470 = vmul.f32 %v421, %v429
    %v471 = vld [vmem:[%s3] sm:$0x1]
    %v473 = vlaneseq
    %v474 = vshrl.u32 %v473, 7
    %v475 = vsub.s32 0, %v474
    %v476 = vrot.slane %v471, %v475
    %v478 = vadd.f32 %v431, %v476
    %v479 = vadd.f32 %v432, %v476
    %v480 = vadd.f32 %v433, %v476
    %v481 = vadd.f32 %v434, %v476
    %v482 = vadd.f32 %v435, %v476
    %v483 = vadd.f32 %v436, %v476
    %v484 = vadd.f32 %v437, %v476
    %v485 = vadd.f32 %v438, %v476
    %v486 = vadd.f32 %v439, %v476
    %v487 = vadd.f32 %v440, %v476
    %v488 = vadd.f32 %v441, %v476
    %v489 = vadd.f32 %v442, %v476
    %v490 = vadd.f32 %v443, %v476
    %v491 = vadd.f32 %v444, %v476
    %v492 = vadd.f32 %v445, %v476
    %v493 = vadd.f32 %v446, %v476
    %v494 = vadd.f32 %v447, %v476
    %v495 = vadd.f32 %v448, %v476
    %v496 = vadd.f32 %v449, %v476
    %v497 = vadd.f32 %v450, %v476
    %v498 = vadd.f32 %v451, %v476
    %v499 = vadd.f32 %v452, %v476
    %v500 = vadd.f32 %v453, %v476
    %v501 = vadd.f32 %v454, %v476
    %v502 = vadd.f32 %v455, %v476
    %v503 = vadd.f32 %v456, %v476
    %v504 = vadd.f32 %v457, %v476
    %v505 = vadd.f32 %v458, %v476
    %v506 = vadd.f32 %v459, %v476
    %v507 = vadd.f32 %v460, %v476
    %v508 = vadd.f32 %v461, %v476
    %v509 = vadd.f32 %v462, %v476
    %v510 = vadd.f32 %v463, %v476
    %v511 = vadd.f32 %v464, %v476
    %v512 = vadd.f32 %v465, %v476
    %v513 = vadd.f32 %v466, %v476
    %v514 = vadd.f32 %v467, %v476
    %v515 = vadd.f32 %v468, %v476
    %v516 = vadd.f32 %v469, %v476
    %v517 = vadd.f32 %v470, %v476
    %v518 = vmax.f32 %v478, 0.0
    %v519 = vmax.f32 %v479, 0.0
    %v520 = vmax.f32 %v480, 0.0
    %v521 = vmax.f32 %v481, 0.0
    %v522 = vmax.f32 %v482, 0.0
    %v523 = vmax.f32 %v483, 0.0
    %v524 = vmax.f32 %v484, 0.0
    %v525 = vmax.f32 %v485, 0.0
    %v526 = vmax.f32 %v486, 0.0
    %v527 = vmax.f32 %v487, 0.0
    %v528 = vmax.f32 %v488, 0.0
    %v529 = vmax.f32 %v489, 0.0
    %v530 = vmax.f32 %v490, 0.0
    %v531 = vmax.f32 %v491, 0.0
    %v532 = vmax.f32 %v492, 0.0
    %v533 = vmax.f32 %v493, 0.0
    %v534 = vmax.f32 %v494, 0.0
    %v535 = vmax.f32 %v495, 0.0
    %v536 = vmax.f32 %v496, 0.0
    %v537 = vmax.f32 %v497, 0.0
    %v538 = vmax.f32 %v498, 0.0
    %v539 = vmax.f32 %v499, 0.0
    %v540 = vmax.f32 %v500, 0.0
    %v541 = vmax.f32 %v501, 0.0
    %v542 = vmax.f32 %v502, 0.0
    %v543 = vmax.f32 %v503, 0.0
    %v544 = vmax.f32 %v504, 0.0
    %v545 = vmax.f32 %v505, 0.0
    %v546 = vmax.f32 %v506, 0.0
    %v547 = vmax.f32 %v507, 0.0
    %v548 = vmax.f32 %v508, 0.0
    %v549 = vmax.f32 %v509, 0.0
    %v550 = vmax.f32 %v510, 0.0
    %v551 = vmax.f32 %v511, 0.0
    %v552 = vmax.f32 %v512, 0.0
    %v553 = vmax.f32 %v513, 0.0
    %v554 = vmax.f32 %v514, 0.0
    %v555 = vmax.f32 %v515, 0.0
    %v556 = vmax.f32 %v516, 0.0
    %v557 = vmax.f32 %v517, 0.0
    %vm558 = vcmask 523264
    %v559 = vsel %vm558, %v518, -inf
    %v560 = vrot.slane %v559, 4
    %v561 = vmax.f32 %v559, %v560
    %v562 = vrot.slane %v561, 2
    %v563 = vmax.f32 %v561, %v562
    %v564 = vrot.slane %v563, 1
    %v565 = vmax.f32 %v563, %v564
    %v566 = vsel %vm558, %v519, -inf
    %v567 = vrot.slane %v566, 4
    %v568 = vmax.f32 %v566, %v567
    %v569 = vrot.slane %v568, 2
    %v570 = vmax.f32 %v568, %v569
    %v571 = vrot.slane %v570, 1
    %v572 = vmax.f32 %v570, %v571
    %v573 = vsel %vm558, %v520, -inf
    %v574 = vrot.slane %v573, 4
    %v575 = vmax.f32 %v573, %v574
    %v576 = vrot.slane %v575, 2
    %v577 = vmax.f32 %v575, %v576
    %v578 = vrot.slane %v577, 1
    %v579 = vmax.f32 %v577, %v578
    %v580 = vsel %vm558, %v521, -inf
    %v581 = vrot.slane %v580, 4
    %v582 = vmax.f32 %v580, %v581
    %v583 = vrot.slane %v582, 2
    %v584 = vmax.f32 %v582, %v583
    %v585 = vrot.slane %v584, 1
    %v586 = vmax.f32 %v584, %v585
    %v587 = vsel %vm558, %v522, -inf
    %v588 = vrot.slane %v587, 4
    %v589 = vmax.f32 %v587, %v588
    %v590 = vrot.slane %v589, 2
    %v591 = vmax.f32 %v589, %v590
    %v592 = vrot.slane %v591, 1
    %v593 = vmax.f32 %v591, %v592
    %v594 = vsel %vm558, %v523, -inf
    %v595 = vrot.slane %v594, 4
    %v596 = vmax.f32 %v594, %v595
    %v597 = vrot.slane %v596, 2
    %v598 = vmax.f32 %v596, %v597
    %v599 = vrot.slane %v598, 1
    %v600 = vmax.f32 %v598, %v599
    %v601 = vsel %vm558, %v524, -inf
    %v602 = vrot.slane %v601, 4
    %v603 = vmax.f32 %v601, %v602
    %v604 = vrot.slane %v603, 2
    %v605 = vmax.f32 %v603, %v604
    %v606 = vrot.slane %v605, 1
    %v607 = vmax.f32 %v605, %v606
    %v608 = vsel %vm558, %v525, -inf
    %v609 = vrot.slane %v608, 4
    %v610 = vmax.f32 %v608, %v609
    %v611 = vrot.slane %v610, 2
    %v612 = vmax.f32 %v610, %v611
    %v613 = vrot.slane %v612, 1
    %v614 = vmax.f32 %v612, %v613
    %v615 = vsel %vm558, %v526, -inf
    %v616 = vrot.slane %v615, 4
    %v617 = vmax.f32 %v615, %v616
    %v618 = vrot.slane %v617, 2
    %v619 = vmax.f32 %v617, %v618
    %v620 = vrot.slane %v619, 1
    %v621 = vmax.f32 %v619, %v620
    %v622 = vsel %vm558, %v527, -inf
    %v623 = vrot.slane %v622, 4
    %v624 = vmax.f32 %v622, %v623
    %v625 = vrot.slane %v624, 2
    %v626 = vmax.f32 %v624, %v625
    %v627 = vrot.slane %v626, 1
    %v628 = vmax.f32 %v626, %v627
    %v629 = vsel %vm558, %v528, -inf
    %v630 = vrot.slane %v629, 4
    %v631 = vmax.f32 %v629, %v630
    %v632 = vrot.slane %v631, 2
    %v633 = vmax.f32 %v631, %v632
    %v634 = vrot.slane %v633, 1
    %v635 = vmax.f32 %v633, %v634
    %v636 = vsel %vm558, %v529, -inf
    %v637 = vrot.slane %v636, 4
    %v638 = vmax.f32 %v636, %v637
    %v639 = vrot.slane %v638, 2
    %v640 = vmax.f32 %v638, %v639
    %v641 = vrot.slane %v640, 1
    %v642 = vmax.f32 %v640, %v641
    %v643 = vsel %vm558, %v530, -inf
    %v644 = vrot.slane %v643, 4
    %v645 = vmax.f32 %v643, %v644
    %v646 = vrot.slane %v645, 2
    %v647 = vmax.f32 %v645, %v646
    %v648 = vrot.slane %v647, 1
    %v649 = vmax.f32 %v647, %v648
    %v650 = vsel %vm558, %v531, -inf
    %v651 = vrot.slane %v650, 4
    %v652 = vmax.f32 %v650, %v651
    %v653 = vrot.slane %v652, 2
    %v654 = vmax.f32 %v652, %v653
    %v655 = vrot.slane %v654, 1
    %v656 = vmax.f32 %v654, %v655
    %v657 = vsel %vm558, %v532, -inf
    %v658 = vrot.slane %v657, 4
    %v659 = vmax.f32 %v657, %v658
    %v660 = vrot.slane %v659, 2
    %v661 = vmax.f32 %v659, %v660
    %v662 = vrot.slane %v661, 1
    %v663 = vmax.f32 %v661, %v662
    %v664 = vsel %vm558, %v533, -inf
    %v665 = vrot.slane %v664, 4
    %v666 = vmax.f32 %v664, %v665
    %v667 = vrot.slane %v666, 2
    %v668 = vmax.f32 %v666, %v667
    %v669 = vrot.slane %v668, 1
    %v670 = vmax.f32 %v668, %v669
    %v671 = vsel %vm558, %v534, -inf
    %v672 = vrot.slane %v671, 4
    %v673 = vmax.f32 %v671, %v672
    %v674 = vrot.slane %v673, 2
    %v675 = vmax.f32 %v673, %v674
    %v676 = vrot.slane %v675, 1
    %v677 = vmax.f32 %v675, %v676
    %v678 = vsel %vm558, %v535, -inf
    %v679 = vrot.slane %v678, 4
    %v680 = vmax.f32 %v678, %v679
    %v681 = vrot.slane %v680, 2
    %v682 = vmax.f32 %v680, %v681
    %v683 = vrot.slane %v682, 1
    %v684 = vmax.f32 %v682, %v683
    %v685 = vsel %vm558, %v536, -inf
    %v686 = vrot.slane %v685, 4
    %v687 = vmax.f32 %v685, %v686
    %v688 = vrot.slane %v687, 2
    %v689 = vmax.f32 %v687, %v688
    %v690 = vrot.slane %v689, 1
    %v691 = vmax.f32 %v689, %v690
    %v692 = vsel %vm558, %v537, -inf
    %v693 = vrot.slane %v692, 4
    %v694 = vmax.f32 %v692, %v693
    %v695 = vrot.slane %v694, 2
    %v696 = vmax.f32 %v694, %v695
    %v697 = vrot.slane %v696, 1
    %v698 = vmax.f32 %v696, %v697
    %v699 = vsel %vm558, %v538, -inf
    %v700 = vrot.slane %v699, 4
    %v701 = vmax.f32 %v699, %v700
    %v702 = vrot.slane %v701, 2
    %v703 = vmax.f32 %v701, %v702
    %v704 = vrot.slane %v703, 1
    %v705 = vmax.f32 %v703, %v704
    %v706 = vsel %vm558, %v539, -inf
    %v707 = vrot.slane %v706, 4
    %v708 = vmax.f32 %v706, %v707
    %v709 = vrot.slane %v708, 2
    %v710 = vmax.f32 %v708, %v709
    %v711 = vrot.slane %v710, 1
    %v712 = vmax.f32 %v710, %v711
    %v713 = vsel %vm558, %v540, -inf
    %v714 = vrot.slane %v713, 4
    %v715 = vmax.f32 %v713, %v714
    %v716 = vrot.slane %v715, 2
    %v717 = vmax.f32 %v715, %v716
    %v718 = vrot.slane %v717, 1
    %v719 = vmax.f32 %v717, %v718
    %v720 = vsel %vm558, %v541, -inf
    %v721 = vrot.slane %v720, 4
    %v722 = vmax.f32 %v720, %v721
    %v723 = vrot.slane %v722, 2
    %v724 = vmax.f32 %v722, %v723
    %v725 = vrot.slane %v724, 1
    %v726 = vmax.f32 %v724, %v725
    %v727 = vsel %vm558, %v542, -inf
    %v728 = vrot.slane %v727, 4
    %v729 = vmax.f32 %v727, %v728
    %v730 = vrot.slane %v729, 2
    %v731 = vmax.f32 %v729, %v730
    %v732 = vrot.slane %v731, 1
    %v733 = vmax.f32 %v731, %v732
    %v734 = vsel %vm558, %v543, -inf
    %v735 = vrot.slane %v734, 4
    %v736 = vmax.f32 %v734, %v735
    %v737 = vrot.slane %v736, 2
    %v738 = vmax.f32 %v736, %v737
    %v739 = vrot.slane %v738, 1
    %v740 = vmax.f32 %v738, %v739
    %v741 = vsel %vm558, %v544, -inf
    %v742 = vrot.slane %v741, 4
    %v743 = vmax.f32 %v741, %v742
    %v744 = vrot.slane %v743, 2
    %v745 = vmax.f32 %v743, %v744
    %v746 = vrot.slane %v745, 1
    %v747 = vmax.f32 %v745, %v746
    %v748 = vsel %vm558, %v545, -inf
    %v749 = vrot.slane %v748, 4
    %v750 = vmax.f32 %v748, %v749
    %v751 = vrot.slane %v750, 2
    %v752 = vmax.f32 %v750, %v751
    %v753 = vrot.slane %v752, 1
    %v754 = vmax.f32 %v752, %v753
    %v755 = vsel %vm558, %v546, -inf
    %v756 = vrot.slane %v755, 4
    %v757 = vmax.f32 %v755, %v756
    %v758 = vrot.slane %v757, 2
    %v759 = vmax.f32 %v757, %v758
    %v760 = vrot.slane %v759, 1
    %v761 = vmax.f32 %v759, %v760
    %v762 = vsel %vm558, %v547, -inf
    %v763 = vrot.slane %v762, 4
    %v764 = vmax.f32 %v762, %v763
    %v765 = vrot.slane %v764, 2
    %v766 = vmax.f32 %v764, %v765
    %v767 = vrot.slane %v766, 1
    %v768 = vmax.f32 %v766, %v767
    %v769 = vsel %vm558, %v548, -inf
    %v770 = vrot.slane %v769, 4
    %v771 = vmax.f32 %v769, %v770
    %v772 = vrot.slane %v771, 2
    %v773 = vmax.f32 %v771, %v772
    %v774 = vrot.slane %v773, 1
    %v775 = vmax.f32 %v773, %v774
    %v776 = vsel %vm558, %v549, -inf
    %v777 = vrot.slane %v776, 4
    %v778 = vmax.f32 %v776, %v777
    %v779 = vrot.slane %v778, 2
    %v780 = vmax.f32 %v778, %v779
    %v781 = vrot.slane %v780, 1
    %v782 = vmax.f32 %v780, %v781
    %v783 = vsel %vm558, %v550, -inf
    %v784 = vrot.slane %v783, 4
    %v785 = vmax.f32 %v783, %v784
    %v786 = vrot.slane %v785, 2
    %v787 = vmax.f32 %v785, %v786
    %v788 = vrot.slane %v787, 1
    %v789 = vmax.f32 %v787, %v788
    %v790 = vsel %vm558, %v551, -inf
    %v791 = vrot.slane %v790, 4
    %v792 = vmax.f32 %v790, %v791
    %v793 = vrot.slane %v792, 2
    %v794 = vmax.f32 %v792, %v793
    %v795 = vrot.slane %v794, 1
    %v796 = vmax.f32 %v794, %v795
    %v797 = vsel %vm558, %v552, -inf
    %v798 = vrot.slane %v797, 4
    %v799 = vmax.f32 %v797, %v798
    %v800 = vrot.slane %v799, 2
    %v801 = vmax.f32 %v799, %v800
    %v802 = vrot.slane %v801, 1
    %v803 = vmax.f32 %v801, %v802
    %v804 = vsel %vm558, %v553, -inf
    %v805 = vrot.slane %v804, 4
    %v806 = vmax.f32 %v804, %v805
    %v807 = vrot.slane %v806, 2
    %v808 = vmax.f32 %v806, %v807
    %v809 = vrot.slane %v808, 1
    %v810 = vmax.f32 %v808, %v809
    %v811 = vsel %vm558, %v554, -inf
    %v812 = vrot.slane %v811, 4
    %v813 = vmax.f32 %v811, %v812
    %v814 = vrot.slane %v813, 2
    %v815 = vmax.f32 %v813, %v814
    %v816 = vrot.slane %v815, 1
    %v817 = vmax.f32 %v815, %v816
    %v818 = vsel %vm558, %v555, -inf
    %v819 = vrot.slane %v818, 4
    %v820 = vmax.f32 %v818, %v819
    %v821 = vrot.slane %v820, 2
    %v822 = vmax.f32 %v820, %v821
    %v823 = vrot.slane %v822, 1
    %v824 = vmax.f32 %v822, %v823
    %v825 = vsel %vm558, %v556, -inf
    %v826 = vrot.slane %v825, 4
    %v827 = vmax.f32 %v825, %v826
    %v828 = vrot.slane %v827, 2
    %v829 = vmax.f32 %v827, %v828
    %v830 = vrot.slane %v829, 1
    %v831 = vmax.f32 %v829, %v830
    %v832 = vsel %vm558, %v557, -inf
    %v833 = vrot.slane %v832, 4
    %v834 = vmax.f32 %v832, %v833
    %v835 = vrot.slane %v834, 2
    %v836 = vmax.f32 %v834, %v835
    %v837 = vrot.slane %v836, 1
    %v838 = vmax.f32 %v836, %v837
    %vm879 = vcmask 1041409
    %v880 = vsel %vm879, %v572, %v565
    %vm881 = vcmask 1042434
    %v882 = vsel %vm881, %v579, %v880
    %vm883 = vcmask 1043459
    %v884 = vsel %vm883, %v586, %v882
    %vm885 = vcmask 1044484
    %v886 = vsel %vm885, %v593, %v884
    %vm887 = vcmask 1045509
    %v888 = vsel %vm887, %v600, %v886
    %vm889 = vcmask 1046534
    %v890 = vsel %vm889, %v607, %v888
    %vm891 = vcmask 1047559
    %v892 = vsel %vm891, %v614, %v890
    %v893 = vsel %vm879, %v628, %v621
    %v894 = vsel %vm881, %v635, %v893
    %v895 = vsel %vm883, %v642, %v894
    %v896 = vsel %vm885, %v649, %v895
    %v897 = vsel %vm887, %v656, %v896
    %v898 = vsel %vm889, %v663, %v897
    %v899 = vsel %vm891, %v670, %v898
    %v900 = vsel %vm879, %v684, %v677
    %v901 = vsel %vm881, %v691, %v900
    %v902 = vsel %vm883, %v698, %v901
    %v903 = vsel %vm885, %v705, %v902
    %v904 = vsel %vm887, %v712, %v903
    %v905 = vsel %vm889, %v719, %v904
    %v906 = vsel %vm891, %v726, %v905
    %v907 = vsel %vm879, %v740, %v733
    %v908 = vsel %vm881, %v747, %v907
    %v909 = vsel %vm883, %v754, %v908
    %v910 = vsel %vm885, %v761, %v909
    %v911 = vsel %vm887, %v768, %v910
    %v912 = vsel %vm889, %v775, %v911
    %v913 = vsel %vm891, %v782, %v912
    %v914 = vsel %vm879, %v796, %v789
    %v915 = vsel %vm881, %v803, %v914
    %v916 = vsel %vm883, %v810, %v915
    %v917 = vsel %vm885, %v817, %v916
    %v918 = vsel %vm887, %v824, %v917
    %v919 = vsel %vm889, %v831, %v918
    %v920 = vsel %vm891, %v838, %v919
    %926 = vst.msk [vmem:[#allocation2] sm:$0xff] %vm558, %v892
    %927 = vst.msk [vmem:[#allocation2 + $0x8] sm:$0xff] %vm558, %v899
    %928 = vst.msk [vmem:[#allocation2 + $0x10] sm:$0xff] %vm558, %v906
    %929 = vst.msk [vmem:[#allocation2 + $0x18] sm:$0xff] %vm558, %v913
    %930 = vst.msk [vmem:[#allocation2 + $0x20] sm:$0xff] %vm558, %v920
    // Predicated region
    $region18: #{tpu_custom_call.1} parent=1 // pred_check
      _
    $region19: #{tpu_custom_call.1} parent=1 // pred_check_branch
      %932 = sbr.rel (0) target = $region21
    $region20: #{tpu_custom_call.1} parent=1 // pred_region
      %s934 = ssub.s32 640, 640
      %935 = vsyncadd [#allocation3], %s934
      %s936 = sshll.u32 [#allocation2], 4
      %s937 = int_to_ptr.vmem [resolvable:$true] %s936
      %942 = dma.vmem_to_hbm [thread:$0]  %s937, 640, %s4, [#allocation3], 128, 128, 8
    $region21: #{tpu_custom_call.1} parent=1 // pred_fallthru
      _
    // Predicated region
    $region22: #{tpu_custom_call.1} parent=1 // pred_check
      _
    $region23: #{tpu_custom_call.1} parent=1 // pred_check_branch
      %944 = sbr.rel (0) target = $region25
    $region24: #{tpu_custom_call.1} parent=1 // pred_region
      %945 = dma.done [#allocation3], 640
    $region25: #{tpu_custom_call.1} parent=1 // pred_fallthru
      _
    %946 = vsyncpa [#allocation3], 1

</llo_original>
